<compile_context>
chip_gen: v6e
topology: v6e:2x2x1
jax: 0.10.0
libtpu: 0.0.40
codegen_flags: <defaults>
</compile_context>

<pallas_src>
import jax
import jax.numpy as jnp
from jax.experimental import pallas as pl
from jax.experimental.pallas import tpu as pltpu

_MIB = 1 << 20


# --------------------------------------------------------------------------
# Kernel A: receptance gate   r = sigmoid( (x + (shift(x)-x)*maa_r) @ Wr )
# Wr is streamed in (C, tr) column tiles; the mixed input xr is computed once
# per batch block (j == 0) and cached in VMEM scratch.
# --------------------------------------------------------------------------
def _receptance_kernel(x_ref, shift_ref, maa_r_ref, rw_ref, r_ref, xr_scr):
    # x_ref:     (bb, T, C)   shift_ref: (bb, 1, C)   maa_r_ref: (1, C)
    # rw_ref:    (C, tr)      column tile of receptance weight (in, out)
    # r_ref:     (bb, T, tr)  output gate tile
    # xr_scr:    (bb*T, C)    cached mixed receptance input (weight dtype)
    j = pl.program_id(1)
    bb, T, C = x_ref.shape
    rows = bb * T

    @pl.when(j == 0)
    def _init():
        x3 = x_ref[...].astype(jnp.float32)
        prev = shift_ref[...].astype(jnp.float32)
        shifted = jnp.concatenate([prev, x3[:, :-1, :]], axis=1)
        xx = (shifted - x3).reshape(rows, C)
        x2 = x3.reshape(rows, C)
        xr = x2 + xx * maa_r_ref[...].astype(jnp.float32)
        xr_scr[...] = xr.astype(xr_scr.dtype)

    r = jnp.dot(xr_scr[...], rw_ref[...], preferred_element_type=jnp.float32)
    r_ref[...] = jax.nn.sigmoid(r).reshape(bb, T, -1).astype(r_ref.dtype)


# --------------------------------------------------------------------------
# Kernel B: FFN   kv = relu((x + (shift(x)-x)*maa_k) @ Wk)^2 @ Wv ; out = r*kv
# Key/value weights streamed as F tiles; f32 kv accumulator in VMEM scratch.
# --------------------------------------------------------------------------
def _ffn_kernel(x_ref, shift_ref, maa_k_ref, r_ref, kw_ref, vw_ref, o_ref,
                xk_scr, kv_scr):
    # x_ref:  (bb, T, C)   shift_ref: (bb, 1, C)   maa_k_ref: (1, C)
    # r_ref:  (bb, T, C)   precomputed sigmoid gate (activation dtype)
    # kw_ref: (C, tf)      key weight tile (in, out)
    # vw_ref: (tf, C)      value weight tile (in, out)
    # o_ref:  (bb, T, C)   output block
    # xk_scr: (bb*T, C)    cached mixed key input (weight dtype)
    # kv_scr: (bb*T, C)    f32 kv accumulator
    f = pl.program_id(1)
    nf = pl.num_programs(1)
    bb, T, C = x_ref.shape
    rows = bb * T

    @pl.when(f == 0)
    def _init():
        x3 = x_ref[...].astype(jnp.float32)
        prev = shift_ref[...].astype(jnp.float32)
        shifted = jnp.concatenate([prev, x3[:, :-1, :]], axis=1)
        xx = (shifted - x3).reshape(rows, C)
        x2 = x3.reshape(rows, C)
        xk = x2 + xx * maa_k_ref[...].astype(jnp.float32)
        xk_scr[...] = xk.astype(xk_scr.dtype)
        kv_scr[...] = jnp.zeros_like(kv_scr)

    k = jnp.dot(xk_scr[...], kw_ref[...], preferred_element_type=jnp.float32)
    k = jnp.maximum(k, 0.0)
    k = (k * k).astype(vw_ref.dtype)                         # relu(k)**2
    kv_scr[...] += jnp.dot(k, vw_ref[...], preferred_element_type=jnp.float32)

    @pl.when(f == nf - 1)
    def _finalize():
        gate = r_ref[...].astype(jnp.float32).reshape(rows, C)
        o_ref[...] = (gate * kv_scr[...]).reshape(bb, T, C).astype(o_ref.dtype)


# --------------------------------------------------------------------------
# Tiling / VMEM helpers
# --------------------------------------------------------------------------
def _vmem_capacity_bytes():
    """Physical VMEM per core; conservative 64 MiB (v7x) fallback."""
    try:
        info = pltpu.get_tpu_info()
        cap = getattr(info, "vmem_capacity_bytes", None)
        if cap:
            return int(cap)
    except Exception:
        pass
    return 64 * _MIB


def _clamp_vmem_limit(est_bytes, cap_bytes):
    """Chip-aware clamp: never request more than physical VMEM - headroom."""
    hi = max(16 * _MIB, cap_bytes - 8 * _MIB)
    return int(min(hi, max(32 * _MIB, int(est_bytes * 1.25))))


def _pick_bb(B, T, target_rows, min_grid=2):
    """Batch block: ~target_rows matmul rows, but keep >= min_grid steps on
    the batch grid axis (so both TensorCores get work) and prefer
    bb*T % 16 == 0 (bf16 sublane packing)."""
    want = max(1, target_rows // max(T, 1))
    ub = B if B < min_grid else max(1, B // min_grid)
    bb_max = max(1, min(ub, want))
    cands = [d for d in range(1, bb_max + 1) if B % d == 0]
    even = [d for d in cands if (d * T) % 16 == 0]
    return (even or cands)[-1]


def _pick_tile(N, max_tile):
    """Largest tile <= max_tile that is a multiple of 128 and divides N."""
    if N <= max_tile or N % 128 != 0:
        return N
    t = max_tile - (max_tile % 128)
    while t >= 128:
        if N % t == 0:
            return t
        t -= 128
    return N


# --------------------------------------------------------------------------
# Wrapper
# --------------------------------------------------------------------------
def rwkv_cmix_x060_infctx(x, shift_state, time_maa_k, time_maa_r,
                          key_w, receptance_w, value_w,
                          *, bb=None, tf=None, tr=None):
    """Pallas forward.

    x:            (B, T, C)
    shift_state:  (B, C)       last_state.shift_state
    time_maa_k:   (1, 1, C)
    time_maa_r:   (1, 1, C)
    key_w:        (C, F)       (in, out) layout
    receptance_w: (C, C)
    value_w:      (F, C)

    Returns (out, new_shift_state): out (B, T, C), new_shift_state (B, C).
    """
    B, T, C = x.shape
    F = key_w.shape[1]
    assert receptance_w.shape == (C, C)
    assert value_w.shape == (F, C)

    cap = _vmem_capacity_bytes()
    big_vmem = cap >= 100 * _MIB         # v5e/v6e (128 MiB) vs v7x (64 MiB)

    if bb is None:
        bb = _pick_bb(B, T, target_rows=1024 if big_vmem else 512)
    if tf is None:
        tf = _pick_tile(F, 1024 if big_vmem else 512)
    if tr is None:
        tr = _pick_tile(C, 512)
    assert B % bb == 0, (B, bb)
    assert F % tf == 0 and (tf == F or tf % 128 == 0), (F, tf)
    assert C % tr == 0 and (tr == C or tr % 128 == 0), (C, tr)

    shift3 = shift_state.reshape(B, 1, C)
    maa_k = time_maa_k.reshape(1, C)
    maa_r = time_maa_r.reshape(1, C)

    rows = bb * T
    w_isz = jnp.dtype(key_w.dtype).itemsize
    x_isz = jnp.dtype(x.dtype).itemsize

    # ---- pass 1: receptance gate (Wr column-tiled) -----------------------
    est_a = (2 * C * tr * w_isz            # Wr tile, double buffered
             + 2 * rows * C * x_isz        # x block
             + 2 * bb * C * x_isz          # shift block
             + 2 * rows * tr * x_isz       # r output tile
             + rows * C * w_isz            # xr scratch
             + 3 * rows * C * 4            # init-phase f32 temporaries
             + 2 * _MIB)
    r = pl.pallas_call(
        _receptance_kernel,
        out_shape=jax.ShapeDtypeStruct((B, T, C), x.dtype),
        grid_spec=pltpu.PrefetchScalarGridSpec(
            num_scalar_prefetch=0,
            grid=(B // bb, C // tr),
            in_specs=[
                pl.BlockSpec((bb, T, C), lambda b, j: (b, 0, 0)),   # x block
                pl.BlockSpec((bb, 1, C), lambda b, j: (b, 0, 0)),   # shift
                pl.BlockSpec((1, C), lambda b, j: (0, 0)),          # maa_r
                pl.BlockSpec((C, tr), lambda b, j: (0, j)),         # Wr tile
            ],
            out_specs=pl.BlockSpec((bb, T, tr), lambda b, j: (b, 0, j)),
            scratch_shapes=[pltpu.VMEM((rows, C), receptance_w.dtype)],
        ),
        compiler_params=pltpu.CompilerParams(
            dimension_semantics=("parallel", "arbitrary"),
            vmem_limit_bytes=_clamp_vmem_limit(est_a, cap)),
        cost_estimate=pl.CostEstimate(
            flops=2 * B * T * C * C,
            transcendentals=B * T * C,
            bytes_accessed=(B // bb) * C * C * w_isz + 3 * B * T * C * x_isz),
    )(x, shift3, maa_r, receptance_w)

    # ---- pass 2: FFN (F-tiled key/value, f32 kv accumulator) -------------
    est_b = (2 * (C * tf + tf * C) * w_isz     # key/value tiles, double buffered
             + 2 * 2 * rows * C * x_isz        # x + r input blocks
             + 2 * rows * C * x_isz            # output block
             + 2 * bb * C * x_isz              # shift block
             + rows * C * (w_isz + 4)          # xk scratch + f32 kv accumulator
             + 3 * rows * C * 4                # init-phase f32 temporaries
             + 2 * _MIB)
    out = pl.pallas_call(
        _ffn_kernel,
        out_shape=jax.ShapeDtypeStruct((B, T, C), x.dtype),
        grid_spec=pltpu.PrefetchScalarGridSpec(
            num_scalar_prefetch=0,
            grid=(B // bb, F // tf),
            in_specs=[
                pl.BlockSpec((bb, T, C), lambda b, f: (b, 0, 0)),   # x block
                pl.BlockSpec((bb, 1, C), lambda b, f: (b, 0, 0)),   # shift
                pl.BlockSpec((1, C), lambda b, f: (0, 0)),          # maa_k
                pl.BlockSpec((bb, T, C), lambda b, f: (b, 0, 0)),   # r gate
                pl.BlockSpec((C, tf), lambda b, f: (0, f)),         # key W tile
                pl.BlockSpec((tf, C), lambda b, f: (f, 0)),         # value W tile
            ],
            out_specs=pl.BlockSpec((bb, T, C), lambda b, f: (b, 0, 0)),
            scratch_shapes=[
                pltpu.VMEM((rows, C), key_w.dtype),     # cached xk
                pltpu.VMEM((rows, C), jnp.float32),     # kv accumulator
            ],
        ),
        compiler_params=pltpu.CompilerParams(
            dimension_semantics=("parallel", "arbitrary"),
            vmem_limit_bytes=_clamp_vmem_limit(est_b, cap)),
        cost_estimate=pl.CostEstimate(
            flops=4 * B * T * C * F,
            transcendentals=0,
            bytes_accessed=(B // bb) * 2 * C * F * w_isz
                           + 4 * B * T * C * x_isz),
    )(x, shift3, maa_k, r, key_w, value_w)

    new_shift_state = x[:, -1, :]       # ChannelMixState(x[:, -1])
    return out, new_shift_state


# --------------------------------------------------------------------------
# Reference + tests
# --------------------------------------------------------------------------
def _reference(x, shift_state, time_maa_k, time_maa_r, key_w, rec_w, val_w):
    xx = jnp.concatenate([shift_state[:, None, :], x[:, :-1]], axis=1) - x
    xk = x + xx * time_maa_k
    xr = x + xx * time_maa_r
    k = jnp.maximum(xk @ key_w, 0.0) ** 2
    kv = k @ val_w
    return jax.nn.sigmoid(xr @ rec_w) * kv, x[:, -1]


def _make_inputs(key, B, T, n_embd, dim_ffn, n_layer=2, layer_id=0):
    ratio_1_to_almost0 = 1.0 - layer_id / n_layer
    ddd = jnp.arange(n_embd, dtype=jnp.float32) / n_embd
    time_maa_k = (1.0 - ddd ** ratio_1_to_almost0).reshape(1, 1, n_embd)
    time_maa_r = (1.0 - ddd ** ratio_1_to_almost0).reshape(1, 1, n_embd)
    k1, k2, k3, k4, k5 = jax.random.split(key, 5)
    key_w = jax.random.normal(k1, (n_embd, dim_ffn), jnp.float32) * 0.02
    receptance_w = jax.random.normal(k2, (n_embd, n_embd), jnp.float32) * 0.02
    value_w = jax.random.normal(k3, (dim_ffn, n_embd), jnp.float32) * 0.02
    x = jax.random.normal(k4, (B, T, n_embd), jnp.float32)
    shift_state = jax.random.normal(k5, (B, n_embd), jnp.float32)
    return (x, shift_state, time_maa_k, time_maa_r,
            key_w, receptance_w, value_w)


if __name__ == "__main__":
    root = jax.random.PRNGKey(0)
    k_a, k_b = jax.random.split(root)

    # --- config 1: small, f32, tf=128 forces 2 F tiles (accumulator path) ---
    B, T, C, F = 2, 8, 64, 256
    inputs = _make_inputs(k_a, B, T, C, F)
    ref_out, ref_state = _reference(*inputs)
    out, new_state = rwkv_cmix_x060_infctx(*inputs, tf=128)
    out = jax.block_until_ready(out)
    new_state = jax.block_until_ready(new_state)
    assert jnp.allclose(out, ref_out, atol=1e-5, rtol=1e-5)
    assert jnp.allclose(new_state, ref_state)

    # --- config 2: bf16 activations + weights (native bf16 MXU matmuls) -----
    bf = [a.astype(jnp.bfloat16) for a in inputs]
    out_bf16, _ = rwkv_cmix_x060_infctx(*bf, tf=128)
    out_bf16 = jax.block_until_ready(out_bf16).astype(jnp.float32)
    assert bool(jnp.all(jnp.isfinite(out_bf16)))
    rel = jnp.max(jnp.abs(out_bf16 - ref_out)) / (jnp.max(jnp.abs(ref_out)) + 1e-12)
    assert float(rel) < 0.1

    # --- config 3: exercises receptance column tiling (tr < C) --------------
    B3, T3, C3, F3 = 2, 8, 256, 512
    inputs3 = _make_inputs(k_b, B3, T3, C3, F3)
    ref_out3, ref_state3 = _reference(*inputs3)
    out3, new_state3 = rwkv_cmix_x060_infctx(*inputs3, tf=256, tr=128)
    out3 = jax.block_until_ready(out3)
    assert jnp.allclose(out3, ref_out3, atol=1e-5, rtol=1e-5)
    assert jnp.allclose(new_state3, ref_state3)

    # TODO(synk): attention_mask path (x * mask) omitted — forward is called
    # with attention_mask=None here; it is a trivial elementwise pre-multiply.
    print("KERNEL_OK")
</pallas_src>

<mosaic_0001>
module attributes {stable_mosaic.version = 11 : i64} {
  func.func @_receptance_kernel(%arg0: i32, %arg1: i32, %arg2: memref<1x8x64xf32, #tpu.memory_space<vmem>>, %arg3: memref<1x1x64xf32, #tpu.memory_space<vmem>>, %arg4: memref<1x64xf32, #tpu.memory_space<vmem>>, %arg5: memref<64x64xf32, #tpu.memory_space<vmem>>, %arg6: memref<1x8x64xf32, #tpu.memory_space<vmem>>, %arg7: memref<8x64xf32, #tpu.memory_space<vmem>>) attributes {dimension_semantics = [#tpu.dimension_semantics<parallel>, #tpu.dimension_semantics<arbitrary>], iteration_bounds = array<i64: 2, 1>, scalar_prefetch = 0 : i64, scratch_operands = 1 : i64, tpu.core_type = #tpu.core_type<tc>, window_params = [{transform_indices = @transform_0, window_bounds = array<i64: 1, 8, 64>}, {transform_indices = @transform_1, window_bounds = array<i64: 1, 1, 64>}, {pipeline_mode = #tpu.pipeline_mode<synchronous>, transform_indices = @transform_2, window_bounds = array<i64: 1, 64>}, {transform_indices = @transform_3, window_bounds = array<i64: 64, 64>}, {transform_indices = @transform_4, window_bounds = array<i64: 1, 8, 64>}]} {
    %c0_i32 = arith.constant 0 : i32
    %0 = arith.cmpi eq, %arg1, %c0_i32 : i32
    %1 = arith.extui %0 : i1 to i32
    %c0_i32_0 = arith.constant 0 : i32
    %2 = arith.cmpi ne, %1, %c0_i32_0 : i32
    scf.if %2 {
      %c0_8 = arith.constant 0 : index
      %c0_9 = arith.constant 0 : index
      %c0_10 = arith.constant 0 : index
      %13 = vector.load %arg2[%c0_8, %c0_9, %c0_10] : memref<1x8x64xf32, #tpu.memory_space<vmem>>, vector<1x8x64xf32>
      %c0_11 = arith.constant 0 : index
      %c0_12 = arith.constant 0 : index
      %c0_13 = arith.constant 0 : index
      %14 = vector.load %arg3[%c0_11, %c0_12, %c0_13] : memref<1x1x64xf32, #tpu.memory_space<vmem>>, vector<1x1x64xf32>
      %15 = vector.extract_strided_slice %13 {offsets = [0, 0, 0], sizes = [1, 7, 64], strides = [1, 1, 1]} : vector<1x8x64xf32> to vector<1x7x64xf32>
      %16 = tpu.concatenate %14, %15 in 1 : vector<1x1x64xf32>, vector<1x7x64xf32> -> vector<1x8x64xf32>
      %17 = arith.subf %16, %13 : vector<1x8x64xf32>
      %18 = vector.shape_cast %17 : vector<1x8x64xf32> to vector<8x64xf32>
      %19 = vector.shape_cast %13 : vector<1x8x64xf32> to vector<8x64xf32>
      %c0_14 = arith.constant 0 : index
      %c0_15 = arith.constant 0 : index
      %20 = vector.load %arg4[%c0_14, %c0_15] : memref<1x64xf32, #tpu.memory_space<vmem>>, vector<1x64xf32>
      %21 = vector.broadcast %20 : vector<1x64xf32> to vector<8x64xf32>
      %22 = arith.mulf %18, %21 : vector<8x64xf32>
      %23 = arith.addf %19, %22 : vector<8x64xf32>
      %c0_16 = arith.constant 0 : index
      %c0_17 = arith.constant 0 : index
      %24 = vector.load %arg7[%c0_16, %c0_17] : memref<8x64xf32, #tpu.memory_space<vmem>>, vector<8x64xf32>
      tpu.vector_store %arg7[%c0_16, %c0_17], %23 {strides = array<i32>} : memref<8x64xf32, #tpu.memory_space<vmem>>, vector<8x64xf32>,
    } else {
    }
    %c0 = arith.constant 0 : index
    %c0_1 = arith.constant 0 : index
    %3 = vector.load %arg7[%c0, %c0_1] : memref<8x64xf32, #tpu.memory_space<vmem>>, vector<8x64xf32>
    %c0_2 = arith.constant 0 : index
    %c0_3 = arith.constant 0 : index
    %4 = vector.load %arg5[%c0_2, %c0_3] : memref<64x64xf32, #tpu.memory_space<vmem>>, vector<64x64xf32>
    %cst = arith.constant dense<0.000000e+00> : vector<8x64xf32>
    %5 = tpu.matmul %3, %4, %cst {dimension_numbers = #tpu.dot_dimension_numbers<[1], [0], [0], [1], [0, 0, 1, 1], [], []>} : vector<8x64xf32>, vector<64x64xf32>, vector<8x64xf32> -> vector<8x64xf32>
    %6 = arith.negf %5 : vector<8x64xf32>
    %7 = math.exp %6 : vector<8x64xf32>
    %cst_4 = arith.constant 1.000000e+00 : f32
    %8 = vector.broadcast %cst_4 : f32 to vector<8x64xf32>
    %9 = arith.addf %8, %7 : vector<8x64xf32>
    %10 = arith.divf %8, %9 : vector<8x64xf32>
    %11 = vector.shape_cast %10 : vector<8x64xf32> to vector<1x8x64xf32>
    %c0_5 = arith.constant 0 : index
    %c0_6 = arith.constant 0 : index
    %c0_7 = arith.constant 0 : index
    %12 = vector.load %arg6[%c0_5, %c0_6, %c0_7] : memref<1x8x64xf32, #tpu.memory_space<vmem>>, vector<1x8x64xf32>
    tpu.vector_store %arg6[%c0_5, %c0_6, %c0_7], %11 {strides = array<i32>} : memref<1x8x64xf32, #tpu.memory_space<vmem>>, vector<1x8x64xf32>,
    return
  }
  func.func @transform_0(%arg0: i32, %arg1: i32) -> (i32, i32, i32) {
    %c0_i32 = arith.constant 0 : i32
    %c0_i32_0 = arith.constant 0 : i32
    %c0_i32_1 = arith.constant 0 : i32
    return %arg0, %c0_i32, %c0_i32_0 : i32, i32, i32
  }
  func.func @transform_1(%arg0: i32, %arg1: i32) -> (i32, i32, i32) {
    %c0_i32 = arith.constant 0 : i32
    %c0_i32_0 = arith.constant 0 : i32
    %c0_i32_1 = arith.constant 0 : i32
    return %arg0, %c0_i32, %c0_i32_0 : i32, i32, i32
  }
  func.func @transform_2(%arg0: i32, %arg1: i32) -> (i32, i32) {
    %c0_i32 = arith.constant 0 : i32
    %c0_i32_0 = arith.constant 0 : i32
    %c0_i32_1 = arith.constant 0 : i32
    return %c0_i32, %c0_i32_0 : i32, i32
  }
  func.func @transform_3(%arg0: i32, %arg1: i32) -> (i32, i32) {
    %c0_i32 = arith.constant 0 : i32
    %c0_i32_0 = arith.constant 0 : i32
    return %c0_i32, %arg1 : i32, i32
  }
  func.func @transform_4(%arg0: i32, %arg1: i32) -> (i32, i32, i32) {
    %c0_i32 = arith.constant 0 : i32
    %c0_i32_0 = arith.constant 0 : i32
    return %arg0, %c0_i32, %arg1 : i32, i32, i32
  }
}

</mosaic_0001>

<llo_original>
// kernel: tpu_custom_call.1
$region0: #{tpu_custom_call.1}
  #allocation0 [shape = 'u32[]', space=smem, size = 0x4, offset = 0x4, fixed_abs, tag = 'smem constant byte address 0x4 - core index']
  #allocation1 [shape = 'u32[144,128]{1,0:T(1,128)}', space=vmem, size = 0x12000, scoped, tag = 'internal scratch']
  #allocation2 [shape = 'f32[8,64]{1,0:T(8,128)}', space=vmem, size = 0x1000, scoped, tag = 'scratch operand']
  %s0 = inlined_call_operand.hbm [shape: f32[2,8,64], index: 0, kind: input, shape index: {}]
  %s1 = inlined_call_operand.hbm [shape: f32[2,1,64], index: 1, kind: input, shape index: {}]
  %s2 = inlined_call_operand.vmem [shape: f32[1,64], index: 2, kind: input, shape index: {}]
  %s3 = inlined_call_operand.hbm [shape: f32[64,64], index: 3, kind: input, shape index: {}]
  %s4 = inlined_call_operand.hbm [shape: f32[2,8,64], index: 4, kind: output, shape index: {}]
  %s5 = sld [smem:[#allocation0]]
  $region65: #{tpu_custom_call.1} parent=0
    _
  %s7 = ssub.s32 1, %s5
  %s8 = scalar_select 0, %s7, %s5
  $region1: #{tpu_custom_call.1} parent=0
    #allocation3 [shape = 'u8[8192]{0}', space=vmem, size = 0x2000, scoped, tag = 'input window, operand 0']
    #allocation4 [shape = 's32[2]{0}', space=sflag, size = 0x8, scoped, tag = 'scoped memory for tpu_custom_call.1']
    #allocation5 [shape = 's32[2]{0}', space=sflag, size = 0x8, scoped, tag = 'scoped memory for tpu_custom_call.1']
    #allocation6 [shape = 'u8[1024]{0}', space=vmem, size = 0x400, scoped, tag = 'input window, operand 1']
    #allocation7 [shape = 's32[2]{0}', space=sflag, size = 0x8, scoped, tag = 'scoped memory for tpu_custom_call.1']
    #allocation8 [shape = 'u8[32768]{0}', space=vmem, size = 0x8000, scoped, tag = 'input window, operand 3, single buffered']
    #allocation9 [shape = 'u8[8192]{0}', space=vmem, size = 0x2000, scoped, tag = 'output window, operand 0']
    %9 = vsyncpa [#allocation4], 0
    %s10 = scalar_lea.sflag [#allocation4], 1
    %11 = vsyncpa %s10, 0
    %12 = vsyncpa [#allocation7], 0
    %s13 = scalar_lea.sflag [#allocation7], 1
    %14 = vsyncpa %s13, 0
    %15 = vsyncpa [#allocation5], 0
    %s16 = scalar_lea.sflag [#allocation5], 1
    %17 = vsyncpa %s16, 0
    loop: start=0, step=1, limit=4
    $region2: #{tpu_custom_call.1} parent=1 // loop_pre_header
      _
    $region3: #{tpu_custom_call.1} parent=1 // loop_header
      %s19 = sphi 0, %s23
      %p20 = scmp.ge.s32.totalorder %s19, 4
      %s26 = sphi 0, %s38
      %s27 = sphi 0, %s34
      %s28 = sphi 0, %s26
      %s29 = sphi 0, %s27
      %s30 = sphi 0, %s28
      %s31 = sphi 0, %s29
      %s41 = sphi 0, %s43
      %s44 = sphi 0, %s41
      %s45 = sphi 0, %s44
      %s61 = sphi 0, %s45
      %s67 = sphi 0, %s69
      %s70 = sphi 0, %s67
      %s71 = sphi 0, %s70
      %s87 = sphi 0, %s71
      %s91 = sphi 0, %s91
      %s93 = sphi 0, %s91
      %s94 = sphi 0, %s93
      %s108 = sphi 0, %s94
      %s114 = sphi 0, %s116
      %s117 = sphi 0, %s114
      %s118 = sphi 0, %s117
      %s134 = sphi 0, %s118
      %s142 = sphi 0, %s144
      %s145 = sphi 0, %s142
      %s146 = sphi 0, %s145
      %s162 = sphi 0, %s146
    $region4: #{tpu_custom_call.1} parent=1 // loop_header_branch
      %22 = sbr.rel (%p20) target = $region8
    $region5: #{tpu_custom_call.1} parent=1 // loop_body
      %s24 = ssub.s32 %s19, 1
      %s25 = ssub.s32 %s19, 2
      %s32 = sadd.s32 1, %s27
      %p33 = scmp.ge.s32.totalorder %s32, 1
      %s34 = scalar_select %p33, 0, %s32
      %s35 = sadd.s32 1, %s26
      %s36 = scalar_select %p33, %s35, %s26
      %p37 = scmp.ge.s32.totalorder %s36, 2
      %s38 = scalar_select %p37, 0, %s36
      %s39 = ssub.s32 %s26, %s38
      %p40 = scmp.eq.s32.totalorder %s39, 0
      %s42 = sadd.s32 %s41, 1
      %s43 = scalar_select %p40, %s41, %s42
      %p46 = pneg %p40
      %p47 = scmp.eq.s32.totalorder %s19, 1
      %p48 = por %p46, %p47
      %p49 = scmp.ne.s32.totalorder %s41, %s44
      %p50 = scmp.eq.s32.totalorder %s19, 0
      %p51 = por %p49, %p50
      %p52 = scmp.ne.s32.totalorder %s41, %s44
      %p53 = scmp.eq.s32.totalorder %s24, 1
      %p54 = por %p52, %p53
      %p55 = scmp.ne.s32.totalorder %s44, %s45
      %p56 = scmp.eq.s32.totalorder %s24, 0
      %p57 = por %p55, %p56
      %p58 = scmp.ne.s32.totalorder %s44, %s45
      %p59 = scmp.eq.s32.totalorder %s25, 1
      %p60 = por %p58, %p59
      %p62 = scmp.ne.s32.totalorder %s45, %s61
      %p63 = scmp.eq.s32.totalorder %s25, 0
      %p64 = por %p62, %p63
      %s65 = ssub.s32 %s26, %s38
      %p66 = scmp.eq.s32.totalorder %s65, 0
      %s68 = sadd.s32 %s67, 1
      %s69 = scalar_select %p66, %s67, %s68
      %p72 = pneg %p66
      %p73 = scmp.eq.s32.totalorder %s19, 1
      %p74 = por %p72, %p73
      %p75 = scmp.ne.s32.totalorder %s67, %s70
      %p76 = scmp.eq.s32.totalorder %s19, 0
      %p77 = por %p75, %p76
      %p78 = scmp.ne.s32.totalorder %s67, %s70
      %p79 = scmp.eq.s32.totalorder %s24, 1
      %p80 = por %p78, %p79
      %p81 = scmp.ne.s32.totalorder %s70, %s71
      %p82 = scmp.eq.s32.totalorder %s24, 0
      %p83 = por %p81, %p82
      %p84 = scmp.ne.s32.totalorder %s70, %s71
      %p85 = scmp.eq.s32.totalorder %s25, 1
      %p86 = por %p84, %p85
      %p88 = scmp.ne.s32.totalorder %s71, %s87
      %p89 = scmp.eq.s32.totalorder %s25, 0
      %p90 = por %p88, %p89
      %s92 = sadd.s32 %s91, 1
      %p95 = scmp.eq.s32.totalorder %s19, 1
      %p96 = scmp.ne.s32.totalorder %s91, %s93
      %p97 = scmp.eq.s32.totalorder %s19, 0
      %p98 = por %p96, %p97
      %p99 = scmp.ne.s32.totalorder %s91, %s93
      %p100 = scmp.eq.s32.totalorder %s24, 1
      %p101 = por %p99, %p100
      %p102 = scmp.ne.s32.totalorder %s93, %s94
      %p103 = scmp.eq.s32.totalorder %s24, 0
      %p104 = por %p102, %p103
      %p105 = scmp.ne.s32.totalorder %s93, %s94
      %p106 = scmp.eq.s32.totalorder %s25, 1
      %p107 = por %p105, %p106
      %p109 = scmp.ne.s32.totalorder %s94, %s108
      %p110 = scmp.eq.s32.totalorder %s25, 0
      %p111 = por %p109, %p110
      %s112 = ssub.s32 %s27, %s34
      %p113 = scmp.eq.s32.totalorder %s112, 0
      %s115 = sadd.s32 %s114, 1
      %s116 = scalar_select %p113, %s114, %s115
      %p119 = pneg %p113
      %p120 = scmp.eq.s32.totalorder %s19, 1
      %p121 = por %p119, %p120
      %p122 = scmp.ne.s32.totalorder %s114, %s117
      %p123 = scmp.eq.s32.totalorder %s19, 0
      %p124 = por %p122, %p123
      %p125 = scmp.ne.s32.totalorder %s114, %s117
      %p126 = scmp.eq.s32.totalorder %s24, 1
      %p127 = por %p125, %p126
      %p128 = scmp.ne.s32.totalorder %s117, %s118
      %p129 = scmp.eq.s32.totalorder %s24, 0
      %p130 = por %p128, %p129
      %p131 = scmp.ne.s32.totalorder %s117, %s118
      %p132 = scmp.eq.s32.totalorder %s25, 1
      %p133 = por %p131, %p132
      %p135 = scmp.ne.s32.totalorder %s118, %s134
      %p136 = scmp.eq.s32.totalorder %s25, 0
      %p137 = por %p135, %p136
      %s138 = ssub.s32 %s26, %s38
      %s139 = ssub.s32 %s27, %s34
      %s140 = sor.u32 %s138, %s139
      %p141 = scmp.eq.s32.totalorder %s140, 0
      %s143 = sadd.s32 %s142, 1
      %s144 = scalar_select %p141, %s142, %s143
      %p147 = pneg %p141
      %p148 = scmp.eq.s32.totalorder %s19, 1
      %p149 = por %p147, %p148
      %p150 = scmp.ne.s32.totalorder %s142, %s145
      %p151 = scmp.eq.s32.totalorder %s19, 0
      %p152 = por %p150, %p151
      %p153 = scmp.ne.s32.totalorder %s142, %s145
      %p154 = scmp.eq.s32.totalorder %s24, 1
      %p155 = por %p153, %p154
      %p156 = scmp.ne.s32.totalorder %s145, %s146
      %p157 = scmp.eq.s32.totalorder %s24, 0
      %p158 = por %p156, %p157
      %p159 = scmp.ne.s32.totalorder %s145, %s146
      %p160 = scmp.eq.s32.totalorder %s25, 1
      %p161 = por %p159, %p160
      %p163 = scmp.ne.s32.totalorder %s146, %s162
      %p164 = scmp.eq.s32.totalorder %s25, 0
      %p165 = por %p163, %p164
      %p166 = scmp.le.s32.totalorder 1, %s19
      %p167 = scmp.lt.s32.totalorder %s19, 3
      %p168 = pnand %p166, %p167
      %p169 = pneg %p168
      // Predicated region
      $region9: #{tpu_custom_call.1} parent=5 // pred_check
        _
      $region10: #{tpu_custom_call.1} parent=5 // pred_check_branch
        %171 = sbr.rel (%p168) target = $region12
      $region11: #{tpu_custom_call.1} parent=5 // pred_region
        %s172 = ssub.s32 %s19, 1
        // Predicated region
        $region13: #{tpu_custom_call.1} parent=11 // pred_check
          %p173 = pneg %p104
        $region14: #{tpu_custom_call.1} parent=11 // pred_check_branch
          %175 = sbr.rel (%p173) target = $region16
        $region15: #{tpu_custom_call.1} parent=11 // pred_region
          _
        $region16: #{tpu_custom_call.1} parent=11 // pred_fallthru
          _
        // Predicated region
        $region17: #{tpu_custom_call.1} parent=11 // pred_check
          %p176 = pneg %p130
        $region18: #{tpu_custom_call.1} parent=11 // pred_check_branch
          %178 = sbr.rel (%p176) target = $region20
        $region19: #{tpu_custom_call.1} parent=11 // pred_region
          %s180 = ssub.s32 1024, 1024
          %181 = vsyncadd [#allocation7], %s180
          %s182 = smul.addr %s29, 128
          %s183 = scalar_lea.hbm %s3, %s182
          %s184 = sshll.u32 [#allocation8], 4
          %s185 = int_to_ptr.vmem [resolvable:$true] %s184
          %190 = dma.hbm_to_vmem [thread:$0]  %s183, 1024, %s185, [#allocation7], 128, 128, 8
        $region20: #{tpu_custom_call.1} parent=11 // pred_fallthru
          _
      $region12: #{tpu_custom_call.1} parent=5 // pred_fallthru
        _
      %p191 = scmp.lt.s32.totalorder %s19, 2
      // Predicated region
      $region21: #{tpu_custom_call.1} parent=5 // pred_check
        %p192 = pneg %p191
      $region22: #{tpu_custom_call.1} parent=5 // pred_check_branch
        %194 = sbr.rel (%p192) target = $region24
      $region23: #{tpu_custom_call.1} parent=5 // pred_region
        // Predicated region
        $region25: #{tpu_custom_call.1} parent=23 // pred_check
          %p195 = pneg %p51
        $region26: #{tpu_custom_call.1} parent=23 // pred_check_branch
          %197 = sbr.rel (%p195) target = $region28
        $region27: #{tpu_custom_call.1} parent=23 // pred_region
          %s198 = sand.u32 %s41, 1
          %s199 = scalar_lea.sflag [#allocation4], %s198
          %s200 = sand.u32 %s41, 1
          %s201 = smul.addr %s200, 8
          %s202 = scalar_lea.vmem [#allocation3], %s201
          %s204 = ssub.s32 128, 128
          %205 = vsyncadd %s199, %s204
          %s206 = smul.addr %s26, 128
          %s207 = scalar_lea.hbm %s0, %s206
          %s209 = sshll.u32 %s202, 4
          %s210 = int_to_ptr.vmem [resolvable:$true] %s209
          %212 = dma.hbm_to_vmem [thread:$0]  %s207, 128, %s210, %s199
        $region28: #{tpu_custom_call.1} parent=23 // pred_fallthru
          _
        // Predicated region
        $region29: #{tpu_custom_call.1} parent=23 // pred_check
          %p213 = pneg %p77
        $region30: #{tpu_custom_call.1} parent=23 // pred_check_branch
          %215 = sbr.rel (%p213) target = $region32
        $region31: #{tpu_custom_call.1} parent=23 // pred_region
          %s216 = sand.u32 %s19, 1
          %s217 = scalar_lea.sflag [#allocation7], %s216
          %s218 = sand.u32 %s67, 1
          %s219 = scalar_lea.vmem [#allocation6], %s218
          %s221 = ssub.s32 16, 16
          %222 = vsyncadd %s217, %s221
          %s223 = smul.addr %s26, 16
          %s224 = scalar_lea.hbm %s1, %s223
          %s226 = sshll.u32 %s219, 4
          %s227 = int_to_ptr.vmem [resolvable:$true] %s226
          %229 = dma.hbm_to_vmem [thread:$0]  %s224, 16, %s227, %s217
        $region32: #{tpu_custom_call.1} parent=23 // pred_fallthru
          _
      $region24: #{tpu_custom_call.1} parent=5 // pred_fallthru
        _
      %p230 = scmp.le.s32.totalorder 1, %s19
      %p231 = scmp.lt.s32.totalorder %s19, 3
      %p232 = pnand %p230, %p231
      %p233 = pneg %p232
      // Predicated region
      $region33: #{tpu_custom_call.1} parent=5 // pred_check
        _
      $region34: #{tpu_custom_call.1} parent=5 // pred_check_branch
        %235 = sbr.rel (%p232) target = $region36
      $region35: #{tpu_custom_call.1} parent=5 // pred_region
        %s236 = ssub.s32 %s19, 1
        %s237 = sand.u32 %s44, 1
        %s238 = scalar_lea.sflag [#allocation4], %s237
        %s239 = sand.u32 %s44, 1
        %s240 = smul.addr %s239, 8
        %s241 = scalar_lea.vmem [#allocation3], %s240
        // Predicated region
        $region37: #{tpu_custom_call.1} parent=35 // pred_check
          %p242 = pneg %p57
        $region38: #{tpu_custom_call.1} parent=35 // pred_check_branch
          %244 = sbr.rel (%p242) target = $region40
        $region39: #{tpu_custom_call.1} parent=35 // pred_region
          %245 = dma.done %s238, 128
        $region40: #{tpu_custom_call.1} parent=35 // pred_fallthru
          _
        %s246 = sand.u32 %s24, 1
        %s247 = scalar_lea.sflag [#allocation7], %s246
        %s248 = sand.u32 %s70, 1
        %s249 = scalar_lea.vmem [#allocation6], %s248
        // Predicated region
        $region41: #{tpu_custom_call.1} parent=35 // pred_check
          %p250 = pneg %p83
        $region42: #{tpu_custom_call.1} parent=35 // pred_check_branch
          %252 = sbr.rel (%p250) target = $region44
        $region43: #{tpu_custom_call.1} parent=35 // pred_region
          %253 = dma.done %s247, 16
        $region44: #{tpu_custom_call.1} parent=35 // pred_fallthru
          _
        // Predicated region
        $region45: #{tpu_custom_call.1} parent=35 // pred_check
          %p254 = pneg %p130
        $region46: #{tpu_custom_call.1} parent=35 // pred_check_branch
          %256 = sbr.rel (%p254) target = $region48
        $region47: #{tpu_custom_call.1} parent=35 // pred_region
          %257 = dma.done [#allocation7], 1024
        $region48: #{tpu_custom_call.1} parent=35 // pred_fallthru
          _
        %s258 = sand.u32 %s44, 1
        %s259 = scalar_lea.sflag [#allocation4], %s258
        %s260 = sand.u32 %s44, 1
        %s261 = smul.addr %s260, 8
        %s262 = scalar_lea.vmem [#allocation3], %s261
        %p263 = pneg %p57
        %p264 = pneg %p54
        %s265 = sand.u32 %s24, 1
        %s266 = scalar_lea.sflag [#allocation7], %s265
        %s267 = sand.u32 %s70, 1
        %s268 = scalar_lea.vmem [#allocation6], %s267
        %p269 = pneg %p83
        %p270 = pneg %p80
        %p271 = pneg %p104
        %p272 = pneg %p101
        %p273 = pneg %p130
        %p274 = pneg %p127
        %p275 = pneg %p158
        %p276 = pneg %p155
        %s277 = sand.u32 %s145, 1
        %s278 = scalar_lea.sflag [#allocation5], %s277
        %s279 = sand.u32 %s145, 1
        %s280 = smul.addr %s279, 8
        %s281 = scalar_lea.vmem [#allocation9], %s280
        %p282 = scmp.eq.s32.totalorder %s29, 0
        // Predicated region
        $region49: #{tpu_custom_call.1} parent=35 // pred_check
          %p283 = pneg %p282
        $region50: #{tpu_custom_call.1} parent=35 // pred_check_branch
          %285 = sbr.rel (%p283) target = $region52
        $region51: #{tpu_custom_call.1} parent=35 // pred_region
          %v286 = vld [vmem:[%s241] sm:$0xff]
          %v287 = vld [vmem:[%s249] sm:$0x1]
          %v289 = vrot.slane %v286, 7
          %vm291 = vcmask 1040384
          %v292 = vsel %vm291, %v287, %v289
          %v293 = vsub.f32 %v292, %v286
          %v294 = vld [vmem:[%s2] sm:$0x1]
          %v296 = vlaneseq
          %v297 = vshrl.u32 %v296, 7
          %v298 = vsub.s32 0, %v297
          %v299 = vrot.slane %v294, %v298
          %v301 = vmul.f32 %v293, %v299
          %v302 = vadd.f32 %v286, %v301
          %vm303 = vcmask 523264
          %304 = vst.msk [vmem:[#allocation2] sm:$0xff] %vm303, %v302
        $region52: #{tpu_custom_call.1} parent=35 // pred_fallthru
          _
        %v305 = vld [vmem:[#allocation2] sm:$0xff]
        %v306 = vld [vmem:[#allocation8] sm:$0xff]
        %v307 = vld [vmem:[#allocation8 + $0x8] sm:$0xff]
        %v308 = vld [vmem:[#allocation8 + $0x10] sm:$0xff]
        %v309 = vld [vmem:[#allocation8 + $0x18] sm:$0xff]
        %v310 = vld [vmem:[#allocation8 + $0x20] sm:$0xff]
        %v311 = vld [vmem:[#allocation8 + $0x28] sm:$0xff]
        %v312 = vld [vmem:[#allocation8 + $0x30] sm:$0xff]
        %v313 = vld [vmem:[#allocation8 + $0x38] sm:$0xff]
        %vm314 = vcmask 523264
        %v316 = vsel %vm314, %v305, 0
        %318 = vmatprep.subr.mxu0 0.0
        %319 = vmatpush1.msra.mxu0 0.0
        %320 = vmatprep.subr.mxu0 0.0
        %321 = vmatpush1.msra.mxu0 0.0
        %322 = vmatprep.subr.mxu0 0.0
        %323 = vmatpush1.msra.mxu0 0.0
        %324 = vmatprep.subr.mxu0 0.0
        %325 = vmatpush1.msra.mxu0 0.0
        %326 = vmatprep.subr.mxu0 0.0
        %327 = vmatpush1.msra.mxu0 0.0
        %328 = vmatprep.subr.mxu0 0.0
        %329 = vmatpush1.msra.mxu0 0.0
        %330 = vmatprep.subr.mxu0 0.0
        %331 = vmatpush1.msra.mxu0 0.0
        %332 = vmatprep.subr.mxu0 0.0
        %333 = vmatpush1.msra.mxu0 0.0
        %334 = vmatprep.subr.mxu0 0.0
        %335 = vmatpush1.msra.mxu0 %v313
        %336 = vmatprep.subr.mxu0 0.0
        %337 = vmatpush1.msra.mxu0 %v312
        %338 = vmatprep.subr.mxu0 0.0
        %339 = vmatpush1.msra.mxu0 %v311
        %340 = vmatprep.subr.mxu0 0.0
        %341 = vmatpush1.msra.mxu0 %v310
        %342 = vmatprep.subr.mxu0 0.0
        %343 = vmatpush1.msra.mxu0 %v309
        %344 = vmatprep.subr.mxu0 0.0
        %345 = vmatpush1.msra.mxu0 %v308
        %346 = vmatprep.subr.mxu0 0.0
        %347 = vmatpush1.msra.mxu0 %v307
        %348 = vmatprep.subr.mxu0 0.0
        %349 = vmatpush1.msra.mxu0 %v306
        %350 = vmatprep.subr.mxu0 0.0
        %351 = vmatpush2.msra.mxu0 0.0
        %352 = vmatprep.subr.mxu0 0.0
        %353 = vmatpush2.msra.mxu0 0.0
        %354 = vmatprep.subr.mxu0 0.0
        %355 = vmatpush2.msra.mxu0 0.0
        %356 = vmatprep.subr.mxu0 0.0
        %357 = vmatpush2.msra.mxu0 0.0
        %358 = vmatprep.subr.mxu0 0.0
        %359 = vmatpush2.msra.mxu0 0.0
        %360 = vmatprep.subr.mxu0 0.0
        %361 = vmatpush2.msra.mxu0 0.0
        %362 = vmatprep.subr.mxu0 0.0
        %363 = vmatpush2.msra.mxu0 0.0
        %364 = vmatprep.subr.mxu0 0.0
        %365 = vmatpush2.msra.mxu0 0.0
        %366 = vmatprep.subr.mxu0 0.0
        %367 = vmatpush2.msra.mxu0 0.0
        %368 = vmatprep.subr.mxu0 0.0
        %369 = vmatpush2.msra.mxu0 0.0
        %370 = vmatprep.subr.mxu0 0.0
        %371 = vmatpush2.msra.mxu0 0.0
        %372 = vmatprep.subr.mxu0 0.0
        %373 = vmatpush2.msra.mxu0 0.0
        %374 = vmatprep.subr.mxu0 0.0
        %375 = vmatpush2.msra.mxu0 0.0
        %376 = vmatprep.subr.mxu0 0.0
        %377 = vmatpush2.msra.mxu0 0.0
        %378 = vmatprep.subr.mxu0 0.0
        %379 = vmatpush2.msra.mxu0 0.0
        %380 = vmatprep.subr.mxu0 0.0
        %381 = vmatpush2.msra.mxu0 0.0
        %382 = vmatprep.mubr.f32.mxu0 0.0
        %383 = vmatmul.mubr.f32.gmra.mxu0 %v316
        %v384 = vpop.f32.mrf.mxu0
        %v385 = vadd.f32 0.0, %v384
        %v386 = vpop.f32.mrf.mxu0
        %387 = vdwg.mxu0
        %v388 = vxor.u32 %v385, 2147483648
        %v389 = vmul.f32 %v388, 1.442695
        %v390 = vpow.pop %v389
        %v391 = vadd.f32 %v390, 1.0
        %v392 = vrcp.pop %v391
        %v393 = vmul.f32 1.0, %v392
        %394 = vst.msk [vmem:[%s281] sm:$0xff] %vm314, %v393
        %s395 = sand.u32 %s145, 1
        %s396 = scalar_lea.sflag [#allocation5], %s395
        %s397 = sand.u32 %s145, 1
        %s398 = smul.addr %s397, 8
        %s399 = scalar_lea.vmem [#allocation9], %s398
        // Predicated region
        $region53: #{tpu_custom_call.1} parent=35 // pred_check
          %p400 = pneg %p155
        $region54: #{tpu_custom_call.1} parent=35 // pred_check_branch
          %402 = sbr.rel (%p400) target = $region56
        $region55: #{tpu_custom_call.1} parent=35 // pred_region
          %s404 = ssub.s32 128, 128
          %405 = vsyncadd %s396, %s404
          %s406 = sadd.s32 %s29, %s28
          %s407 = smul.addr %s406, 128
          %s408 = scalar_lea.hbm %s4, %s407
          %s410 = sshll.u32 %s399, 4
          %s411 = int_to_ptr.vmem [resolvable:$true] %s410
          %413 = dma.vmem_to_hbm [thread:$0]  %s411, 128, %s408, %s396
        $region56: #{tpu_custom_call.1} parent=35 // pred_fallthru
          _
      $region36: #{tpu_custom_call.1} parent=5 // pred_fallthru
        _
      %p414 = scmp.le.s32.totalorder 2, %s19
      // Predicated region
      $region57: #{tpu_custom_call.1} parent=5 // pred_check
        %p415 = pneg %p414
      $region58: #{tpu_custom_call.1} parent=5 // pred_check_branch
        %417 = sbr.rel (%p415) target = $region60
      $region59: #{tpu_custom_call.1} parent=5 // pred_region
        %s418 = ssub.s32 %s19, 2
        // Predicated region
        $region61: #{tpu_custom_call.1} parent=59 // pred_check
          %p419 = pneg %p161
        $region62: #{tpu_custom_call.1} parent=59 // pred_check_branch
          %421 = sbr.rel (%p419) target = $region64
        $region63: #{tpu_custom_call.1} parent=59 // pred_region
          %s422 = sand.u32 %s146, 1
          %s423 = scalar_lea.sflag [#allocation5], %s422
          %s424 = sand.u32 %s146, 1
          %s425 = smul.addr %s424, 8
          %s426 = scalar_lea.vmem [#allocation9], %s425
          %427 = dma.done %s423, 128
        $region64: #{tpu_custom_call.1} parent=59 // pred_fallthru
          _
      $region60: #{tpu_custom_call.1} parent=5 // pred_fallthru
        _
    $region6: #{tpu_custom_call.1} parent=1 // loop_footer
      %s23 = sadd.s32 1, %s19
    $region7: #{tpu_custom_call.1} parent=1 // loop_footer_branch
      %18 = sbr.rel target = $region3
    $region8: #{tpu_custom_call.1} parent=1 // loop_exit
      _
    %428 = vsyncpa [#allocation4], 1
    %s429 = scalar_lea.sflag [#allocation4], 1
    %430 = vsyncpa %s429, 1
    %431 = vsyncpa [#allocation7], 1
    %s432 = scalar_lea.sflag [#allocation7], 1
    %433 = vsyncpa %s432, 1
    %434 = vsyncpa [#allocation5], 1
    %s435 = scalar_lea.sflag [#allocation5], 1
    %436 = vsyncpa %s435, 1

</llo_original>
